<compile_context>
chip_gen: v7x
topology: tpu7x:2x2x1
jax: 0.10.0
libtpu: 0.0.40
codegen_flags: <defaults>
</compile_context>

<pallas_src>
import jax
import jax.numpy as jnp
from jax import lax
from jax.experimental import pallas as pl
from jax.experimental.pallas import tpu as pltpu


# ----------------------------------------------------------------------------
# Pallas kernel: one MergeModule applied to one batch element (fused even/odd).
# ----------------------------------------------------------------------------
def merge_kernel(x_ref, xu_ref, wx_ref, wxn_ref, wu_ref, b1_ref,
                 wm_ref, wdn_ref, wup_ref, b2_ref, out_ref):
    """x_ref  : (1, Lin, Cin)   previous-level feature (channels last)
       xu_ref : (1, Lin, 2C)    Unet feature, [even positions | odd positions]
       out_ref: (1, Lin, 2C)    merge_conv output, [at 2i | at 2i+1]
    """
    f32 = jnp.float32
    x = x_ref[0]                       # (Lin, Cin)
    xu = xu_ref[0]                     # (Lin, 2C)
    lin = x.shape[0]

    # x_next[i] = x[i+1] (zero past the end): XLU roll (+ boundary mask)
    # instead of a dense (Lin, Lin) shift-matrix matmul.
    row_x = lax.broadcasted_iota(jnp.int32, x.shape, 0)
    x_next = jnp.where(row_x == lin - 1, 0.0,
                       pltpu.roll(x, shift=lin - 1, axis=0))

    # Stage 1 (fused): ConvTranspose1d(k=3, s=2, p=1, output_padding=1)
    #                  + Unet 1x1 Conv1d + both biases.
    #   m[:, :C] = m[2i]   = x[i]@Wt1             + xu_e[i]@Wu + bt + bu
    #   m[:, C:] = m[2i+1] = x[i]@Wt2 + x[i+1]@Wt0 + xu_o[i]@Wu + bt + bu
    m = (jnp.dot(x, wx_ref[...], preferred_element_type=f32)
         + jnp.dot(x_next, wxn_ref[...], preferred_element_type=f32)
         + jnp.dot(xu, wu_ref[...], preferred_element_type=f32)
         + b1_ref[...])

    # Stage 2 (fused): merge Conv1d(k=3, padding=1) on the interleaved m,
    # expressed on the even/odd halves.  m_dn[i] = m[i-1], m_up[i] = m[i+1]
    # (zero at the sequence boundary = the conv's zero padding).
    row_m = lax.broadcasted_iota(jnp.int32, m.shape, 0)
    m_dn = jnp.where(row_m == 0, 0.0, pltpu.roll(m, shift=1, axis=0))
    m_up = jnp.where(row_m == lin - 1, 0.0,
                     pltpu.roll(m, shift=lin - 1, axis=0))

    #   out[2i]   = m[2i-1]@Wm0 + m[2i]@Wm1 + m[2i+1]@Wm2 + bm
    #   out[2i+1] = m[2i]@Wm0   + m[2i+1]@Wm1 + m[2i+2]@Wm2 + bm
    out = (jnp.dot(m, wm_ref[...], preferred_element_type=f32)
           + jnp.dot(m_dn, wdn_ref[...], preferred_element_type=f32)
           + jnp.dot(m_up, wup_ref[...], preferred_element_type=f32)
           + b2_ref[...])

    out_ref[0] = out.astype(out_ref.dtype)


# ----------------------------------------------------------------------------
# Trace-time weight packing: fuse the per-tap weights into wide matrices so a
# MergeModule is 6 matmuls with N = 2*Cout (wider MXU N, fewer issues).
# ----------------------------------------------------------------------------
def _pack_merge_params(params, dtype=jnp.float32):
    wt0, wt1, wt2, bt, wu, bu, wm0, wm1, wm2, bm = params
    cin, c = wt0.shape
    z_ic = jnp.zeros((cin, c), dtype)
    z_cc = jnp.zeros((c, c), dtype)
    w_x = jnp.concatenate([wt1, wt2], axis=1)              # x      -> [m_e | m_o]
    w_xn = jnp.concatenate([z_ic, wt0], axis=1)            # x_next -> [ 0  | m_o]
    w_u = jnp.block([[wu, z_cc], [z_cc, wu]])              # [xu_e|xu_o] -> [u_e|u_o]
    b1 = jnp.concatenate([bt + bu, bt + bu], axis=1)       # (1, 2C)
    w_m = jnp.block([[wm1, wm0], [wm2, wm1]])              # m    -> [out_e | out_o]
    w_dn = jnp.block([[z_cc, z_cc], [wm0, z_cc]])          # m_dn -> [out_e |   0  ]
    w_up = jnp.block([[z_cc, wm2], [z_cc, z_cc]])          # m_up -> [  0   | out_o]
    b2 = jnp.concatenate([bm, bm], axis=1)                 # (1, 2C)
    return w_x, w_xn, w_u, b1, w_m, w_dn, w_up, b2


# ----------------------------------------------------------------------------
# Wrapper for one MergeModule.  x in NLC, Unet feature in NCL, output in NLC.
# ----------------------------------------------------------------------------
def merge_module_pallas(x_nlc, xu_ncl, params):
    B, Lin, Cin = x_nlc.shape
    _, Cout, Lout = xu_ncl.shape
    assert Lout == 2 * Lin, "only output_padding=1 supported"
    # TODO(synk): output_padding=0 (odd output length) not implemented.

    # Unet feature: one NCL->NLC transpose, then a FREE reshape to the
    # even|odd channel-concatenated form (B, Lin, 2*Cout).  No strided slices.
    xu2 = jnp.transpose(xu_ncl, (0, 2, 1)).reshape(B, Lin, 2 * Cout)

    packed = _pack_merge_params(params, x_nlc.dtype)

    def xmap(b):
        return (b, 0, 0)

    def wmap(b):
        return (0, 0)

    w_specs = [pl.BlockSpec(w.shape, wmap) for w in packed]

    out2 = pl.pallas_call(
        merge_kernel,
        out_shape=jax.ShapeDtypeStruct((B, Lin, 2 * Cout), jnp.float32),
        grid=(B,),
        in_specs=[pl.BlockSpec((1, Lin, Cin), xmap),
                  pl.BlockSpec((1, Lin, 2 * Cout), xmap)] + w_specs,
        out_specs=pl.BlockSpec((1, Lin, 2 * Cout), xmap),
        compiler_params=pltpu.CompilerParams(
            dimension_semantics=("parallel",),
            # lift v5e's 16 MiB scoped-VMEM default; stays under v7x's 64 MiB.
            vmem_limit_bytes=48 * 1024 * 1024),
    )(x_nlc, xu2, *packed)

    # FREE reshape re-interleave: (B, Lin, 2*Cout) -> (B, Lout, Cout) NLC.
    return out2.reshape(B, Lout, Cout)


# ----------------------------------------------------------------------------
# UpSample forward (NCL in / NCL out, matching PyTorch).
# ----------------------------------------------------------------------------
def upsample_forward(input_feature_ncl, feature_list_ncl, params_list):
    out_list = [input_feature_ncl]
    feat_nlc = jnp.transpose(input_feature_ncl, (0, 2, 1))   # NCL -> NLC once
    for idx, params in enumerate(params_list):
        feat_nlc = merge_module_pallas(feat_nlc, feature_list_ncl[-idx - 2],
                                       params)
        out_list.append(jnp.transpose(feat_nlc, (0, 2, 1)))  # NLC -> NCL (API)
    return out_list


# ----------------------------------------------------------------------------
# Deterministic parameter init (PyTorch shapes, converted to matmul layout).
# ----------------------------------------------------------------------------
def init_merge_params(key, cin, cout):
    ks = jax.random.split(key, 6)
    wt = jax.random.normal(ks[0], (cin, cout, 3), jnp.float32) * 0.1   # ConvTranspose1d
    bt = jax.random.normal(ks[1], (cout,), jnp.float32) * 0.1
    wu = jax.random.normal(ks[2], (cout, cout, 1), jnp.float32) * 0.1  # Conv1d 1x1
    bu = jax.random.normal(ks[3], (cout,), jnp.float32) * 0.1
    wm = jax.random.normal(ks[4], (cout, cout, 3), jnp.float32) * 0.1  # Conv1d k=3
    bm = jax.random.normal(ks[5], (cout,), jnp.float32) * 0.1
    return (wt[:, :, 0], wt[:, :, 1], wt[:, :, 2], bt.reshape(1, cout),
            wu[:, :, 0].T, bu.reshape(1, cout),
            wm[:, :, 0].T, wm[:, :, 1].T, wm[:, :, 2].T, bm.reshape(1, cout))


# ----------------------------------------------------------------------------
# Pure-JAX reference (standard ConvTranspose / Conv definitions) for checking.
# ----------------------------------------------------------------------------
def ref_merge(x_nlc, xu_nlc, params):
    wt0, wt1, wt2, bt, wu, bu, wm0, wm1, wm2, bm = params
    B, Lin, Cin = x_nlc.shape
    Lout = 2 * Lin
    Cout = wt0.shape[1]
    wts = [wt0, wt1, wt2]
    y = jnp.zeros((B, Lout, Cout), jnp.float32)
    for i in range(Lin):
        for k in range(3):
            t = 2 * i - 1 + k
            if 0 <= t < Lout:
                y = y.at[:, t, :].add(x_nlc[:, i, :] @ wts[k])
    y = y + bt
    u = jnp.einsum('blc,cd->bld', xu_nlc, wu) + bu
    m = y + u
    mp = jnp.pad(m, ((0, 0), (1, 1), (0, 0)))
    out = (jnp.einsum('blc,cd->bld', mp[:, 0:Lout, :], wm0)
           + jnp.einsum('blc,cd->bld', mp[:, 1:Lout + 1, :], wm1)
           + jnp.einsum('blc,cd->bld', mp[:, 2:Lout + 2, :], wm2) + bm)
    return out


def ref_upsample(input_feature_ncl, feature_list_ncl, params_list):
    out_list = [input_feature_ncl]
    feat = jnp.transpose(input_feature_ncl, (0, 2, 1))
    for idx, params in enumerate(params_list):
        unet_in = jnp.transpose(feature_list_ncl[-idx - 2], (0, 2, 1))
        feat = ref_merge(feat, unet_in, params)
        out_list.append(jnp.transpose(feat, (0, 2, 1)))
    return out_list


if __name__ == "__main__":
    key = jax.random.PRNGKey(0)
    B, L = 2, 8
    in_dim = 16
    out_dims = [16, 8]
    out_padding = [1, 1]   # only output_padding=1 implemented

    k_in, k_f1, k_f2, k_p1, k_p2 = jax.random.split(key, 5)
    # layout: NCL (PyTorch conv1d convention) at the module boundary.
    input_feature = jax.random.normal(k_in, (B, in_dim, L), jnp.float32)
    f_mid = jax.random.normal(k_f1, (B, out_dims[0], 2 * L), jnp.float32)
    f_shallow = jax.random.normal(k_f2, (B, out_dims[1], 4 * L), jnp.float32)
    feature_list = [f_shallow, f_mid, input_feature]

    params_list = []
    cin = in_dim
    for cout, pk in zip(out_dims, [k_p1, k_p2]):
        params_list.append(init_merge_params(pk, cin, cout))
        cin = cout

    outs = upsample_forward(input_feature, feature_list, params_list)
    outs = [jax.block_until_ready(o) for o in outs]

    refs = ref_upsample(input_feature, feature_list, params_list)
    for o, r in zip(outs, refs):
        assert o.shape == r.shape, (o.shape, r.shape)
        err = float(jnp.max(jnp.abs(o - r)))
        assert jnp.allclose(o, r, atol=5e-2, rtol=5e-2), err

    print("KERNEL_OK")
</pallas_src>

<mosaic_0001>
module attributes {stable_mosaic.version = 11 : i64} {
  func.func @merge_kernel(%arg0: i32, %arg1: memref<1x8x16xf32, #tpu.memory_space<vmem>>, %arg2: memref<1x8x32xf32, #tpu.memory_space<vmem>>, %arg3: memref<16x32xf32, #tpu.memory_space<vmem>>, %arg4: memref<16x32xf32, #tpu.memory_space<vmem>>, %arg5: memref<32x32xf32, #tpu.memory_space<vmem>>, %arg6: memref<1x32xf32, #tpu.memory_space<vmem>>, %arg7: memref<32x32xf32, #tpu.memory_space<vmem>>, %arg8: memref<32x32xf32, #tpu.memory_space<vmem>>, %arg9: memref<32x32xf32, #tpu.memory_space<vmem>>, %arg10: memref<1x32xf32, #tpu.memory_space<vmem>>, %arg11: memref<1x8x32xf32, #tpu.memory_space<vmem>>) attributes {dimension_semantics = [#tpu.dimension_semantics<parallel>], iteration_bounds = array<i64: 2>, scalar_prefetch = 0 : i64, scratch_operands = 0 : i64, tpu.core_type = #tpu.core_type<tc>, window_params = [{transform_indices = @transform_0, window_bounds = array<i64: 1, 8, 16>}, {transform_indices = @transform_1, window_bounds = array<i64: 1, 8, 32>}, {pipeline_mode = #tpu.pipeline_mode<synchronous>, transform_indices = @transform_2, window_bounds = array<i64: 16, 32>}, {pipeline_mode = #tpu.pipeline_mode<synchronous>, transform_indices = @transform_3, window_bounds = array<i64: 16, 32>}, {pipeline_mode = #tpu.pipeline_mode<synchronous>, transform_indices = @transform_4, window_bounds = array<i64: 32, 32>}, {pipeline_mode = #tpu.pipeline_mode<synchronous>, transform_indices = @transform_5, window_bounds = array<i64: 1, 32>}, {pipeline_mode = #tpu.pipeline_mode<synchronous>, transform_indices = @transform_6, window_bounds = array<i64: 32, 32>}, {pipeline_mode = #tpu.pipeline_mode<synchronous>, transform_indices = @transform_7, window_bounds = array<i64: 32, 32>}, {pipeline_mode = #tpu.pipeline_mode<synchronous>, transform_indices = @transform_8, window_bounds = array<i64: 32, 32>}, {pipeline_mode = #tpu.pipeline_mode<synchronous>, transform_indices = @transform_9, window_bounds = array<i64: 1, 32>}, {transform_indices = @transform_10, window_bounds = array<i64: 1, 8, 32>}]} {
    %c0 = arith.constant 0 : index
    %c0_0 = arith.constant 0 : index
    %c0_1 = arith.constant 0 : index
    %0 = vector.load %arg1[%c0, %c0_0, %c0_1] : memref<1x8x16xf32, #tpu.memory_space<vmem>>, vector<1x8x16xf32>
    %1 = vector.shape_cast %0 : vector<1x8x16xf32> to vector<8x16xf32>
    %c0_2 = arith.constant 0 : index
    %c0_3 = arith.constant 0 : index
    %c0_4 = arith.constant 0 : index
    %2 = vector.load %arg2[%c0_2, %c0_3, %c0_4] : memref<1x8x32xf32, #tpu.memory_space<vmem>>, vector<1x8x32xf32>
    %3 = vector.shape_cast %2 : vector<1x8x32xf32> to vector<8x32xf32>
    %4 = tpu.iota {dimensions = array<i32: 0>} : vector<8x16xi32>
    %c7_i32 = arith.constant 7 : i32
    %5 = vector.broadcast %c7_i32 : i32 to vector<8x16xi32>
    %6 = arith.cmpi eq, %4, %5 : vector<8x16xi32>
    %c7_i32_5 = arith.constant 7 : i32
    %7 = tpu.dynamic_rotate %1 by %c7_i32_5 dim 0 : vector<8x16xf32>, i32 -> vector<8x16xf32>
    %cst = arith.constant 0.000000e+00 : f32
    %8 = vector.broadcast %cst : f32 to vector<8x16xf32>
    %9 = arith.select %6, %8, %7 : vector<8x16xi1>, vector<8x16xf32>
    %c0_6 = arith.constant 0 : index
    %c0_7 = arith.constant 0 : index
    %10 = vector.load %arg3[%c0_6, %c0_7] : memref<16x32xf32, #tpu.memory_space<vmem>>, vector<16x32xf32>
    %cst_8 = arith.constant dense<0.000000e+00> : vector<8x32xf32>
    %11 = tpu.matmul %1, %10, %cst_8 {dimension_numbers = #tpu.dot_dimension_numbers<[1], [0], [0], [1], [0, 0, 1, 1], [], []>} : vector<8x16xf32>, vector<16x32xf32>, vector<8x32xf32> -> vector<8x32xf32>
    %c0_9 = arith.constant 0 : index
    %c0_10 = arith.constant 0 : index
    %12 = vector.load %arg4[%c0_9, %c0_10] : memref<16x32xf32, #tpu.memory_space<vmem>>, vector<16x32xf32>
    %cst_11 = arith.constant dense<0.000000e+00> : vector<8x32xf32>
    %13 = tpu.matmul %9, %12, %cst_11 {dimension_numbers = #tpu.dot_dimension_numbers<[1], [0], [0], [1], [0, 0, 1, 1], [], []>} : vector<8x16xf32>, vector<16x32xf32>, vector<8x32xf32> -> vector<8x32xf32>
    %14 = arith.addf %11, %13 : vector<8x32xf32>
    %c0_12 = arith.constant 0 : index
    %c0_13 = arith.constant 0 : index
    %15 = vector.load %arg5[%c0_12, %c0_13] : memref<32x32xf32, #tpu.memory_space<vmem>>, vector<32x32xf32>
    %cst_14 = arith.constant dense<0.000000e+00> : vector<8x32xf32>
    %16 = tpu.matmul %3, %15, %cst_14 {dimension_numbers = #tpu.dot_dimension_numbers<[1], [0], [0], [1], [0, 0, 1, 1], [], []>} : vector<8x32xf32>, vector<32x32xf32>, vector<8x32xf32> -> vector<8x32xf32>
    %17 = arith.addf %14, %16 : vector<8x32xf32>
    %c0_15 = arith.constant 0 : index
    %c0_16 = arith.constant 0 : index
    %18 = vector.load %arg6[%c0_15, %c0_16] : memref<1x32xf32, #tpu.memory_space<vmem>>, vector<1x32xf32>
    %19 = vector.broadcast %18 : vector<1x32xf32> to vector<8x32xf32>
    %20 = arith.addf %17, %19 : vector<8x32xf32>
    %21 = tpu.iota {dimensions = array<i32: 0>} : vector<8x32xi32>
    %c0_i32 = arith.constant 0 : i32
    %22 = vector.broadcast %c0_i32 : i32 to vector<8x32xi32>
    %23 = arith.cmpi eq, %21, %22 : vector<8x32xi32>
    %c1_i32 = arith.constant 1 : i32
    %24 = tpu.dynamic_rotate %20 by %c1_i32 dim 0 : vector<8x32xf32>, i32 -> vector<8x32xf32>
    %cst_17 = arith.constant 0.000000e+00 : f32
    %25 = vector.broadcast %cst_17 : f32 to vector<8x32xf32>
    %26 = arith.select %23, %25, %24 : vector<8x32xi1>, vector<8x32xf32>
    %c7_i32_18 = arith.constant 7 : i32
    %27 = vector.broadcast %c7_i32_18 : i32 to vector<8x32xi32>
    %28 = arith.cmpi eq, %21, %27 : vector<8x32xi32>
    %c7_i32_19 = arith.constant 7 : i32
    %29 = tpu.dynamic_rotate %20 by %c7_i32_19 dim 0 : vector<8x32xf32>, i32 -> vector<8x32xf32>
    %cst_20 = arith.constant 0.000000e+00 : f32
    %30 = vector.broadcast %cst_20 : f32 to vector<8x32xf32>
    %31 = arith.select %28, %30, %29 : vector<8x32xi1>, vector<8x32xf32>
    %c0_21 = arith.constant 0 : index
    %c0_22 = arith.constant 0 : index
    %32 = vector.load %arg7[%c0_21, %c0_22] : memref<32x32xf32, #tpu.memory_space<vmem>>, vector<32x32xf32>
    %cst_23 = arith.constant dense<0.000000e+00> : vector<8x32xf32>
    %33 = tpu.matmul %20, %32, %cst_23 {dimension_numbers = #tpu.dot_dimension_numbers<[1], [0], [0], [1], [0, 0, 1, 1], [], []>} : vector<8x32xf32>, vector<32x32xf32>, vector<8x32xf32> -> vector<8x32xf32>
    %c0_24 = arith.constant 0 : index
    %c0_25 = arith.constant 0 : index
    %34 = vector.load %arg8[%c0_24, %c0_25] : memref<32x32xf32, #tpu.memory_space<vmem>>, vector<32x32xf32>
    %cst_26 = arith.constant dense<0.000000e+00> : vector<8x32xf32>
    %35 = tpu.matmul %26, %34, %cst_26 {dimension_numbers = #tpu.dot_dimension_numbers<[1], [0], [0], [1], [0, 0, 1, 1], [], []>} : vector<8x32xf32>, vector<32x32xf32>, vector<8x32xf32> -> vector<8x32xf32>
    %36 = arith.addf %33, %35 : vector<8x32xf32>
    %c0_27 = arith.constant 0 : index
    %c0_28 = arith.constant 0 : index
    %37 = vector.load %arg9[%c0_27, %c0_28] : memref<32x32xf32, #tpu.memory_space<vmem>>, vector<32x32xf32>
    %cst_29 = arith.constant dense<0.000000e+00> : vector<8x32xf32>
    %38 = tpu.matmul %31, %37, %cst_29 {dimension_numbers = #tpu.dot_dimension_numbers<[1], [0], [0], [1], [0, 0, 1, 1], [], []>} : vector<8x32xf32>, vector<32x32xf32>, vector<8x32xf32> -> vector<8x32xf32>
    %39 = arith.addf %36, %38 : vector<8x32xf32>
    %c0_30 = arith.constant 0 : index
    %c0_31 = arith.constant 0 : index
    %40 = vector.load %arg10[%c0_30, %c0_31] : memref<1x32xf32, #tpu.memory_space<vmem>>, vector<1x32xf32>
    %41 = vector.broadcast %40 : vector<1x32xf32> to vector<8x32xf32>
    %42 = arith.addf %39, %41 : vector<8x32xf32>
    %c0_32 = arith.constant 0 : index
    %c0_33 = arith.constant 0 : index
    %c0_34 = arith.constant 0 : index
    %43 = vector.load %arg11[%c0_32, %c0_33, %c0_34] : memref<1x8x32xf32, #tpu.memory_space<vmem>>, vector<1x8x32xf32>
    %44 = vector.shape_cast %43 : vector<1x8x32xf32> to vector<8x32xf32>
    %45 = vector.shape_cast %42 : vector<8x32xf32> to vector<1x8x32xf32>
    tpu.vector_store %arg11[%c0_32, %c0_33, %c0_34], %45 {strides = array<i32>} : memref<1x8x32xf32, #tpu.memory_space<vmem>>, vector<1x8x32xf32>,
    return
  }
  func.func @transform_0(%arg0: i32) -> (i32, i32, i32) {
    %c0_i32 = arith.constant 0 : i32
    %c0_i32_0 = arith.constant 0 : i32
    %c0_i32_1 = arith.constant 0 : i32
    return %arg0, %c0_i32, %c0_i32_0 : i32, i32, i32
  }
  func.func @transform_1(%arg0: i32) -> (i32, i32, i32) {
    %c0_i32 = arith.constant 0 : i32
    %c0_i32_0 = arith.constant 0 : i32
    %c0_i32_1 = arith.constant 0 : i32
    return %arg0, %c0_i32, %c0_i32_0 : i32, i32, i32
  }
  func.func @transform_2(%arg0: i32) -> (i32, i32) {
    %c0_i32 = arith.constant 0 : i32
    %c0_i32_0 = arith.constant 0 : i32
    %c0_i32_1 = arith.constant 0 : i32
    return %c0_i32, %c0_i32_0 : i32, i32
  }
  func.func @transform_3(%arg0: i32) -> (i32, i32) {
    %c0_i32 = arith.constant 0 : i32
    %c0_i32_0 = arith.constant 0 : i32
    %c0_i32_1 = arith.constant 0 : i32
    return %c0_i32, %c0_i32_0 : i32, i32
  }
  func.func @transform_4(%arg0: i32) -> (i32, i32) {
    %c0_i32 = arith.constant 0 : i32
    %c0_i32_0 = arith.constant 0 : i32
    %c0_i32_1 = arith.constant 0 : i32
    return %c0_i32, %c0_i32_0 : i32, i32
  }
  func.func @transform_5(%arg0: i32) -> (i32, i32) {
    %c0_i32 = arith.constant 0 : i32
    %c0_i32_0 = arith.constant 0 : i32
    %c0_i32_1 = arith.constant 0 : i32
    return %c0_i32, %c0_i32_0 : i32, i32
  }
  func.func @transform_6(%arg0: i32) -> (i32, i32) {
    %c0_i32 = arith.constant 0 : i32
    %c0_i32_0 = arith.constant 0 : i32
    %c0_i32_1 = arith.constant 0 : i32
    return %c0_i32, %c0_i32_0 : i32, i32
  }
  func.func @transform_7(%arg0: i32) -> (i32, i32) {
    %c0_i32 = arith.constant 0 : i32
    %c0_i32_0 = arith.constant 0 : i32
    %c0_i32_1 = arith.constant 0 : i32
    return %c0_i32, %c0_i32_0 : i32, i32
  }
  func.func @transform_8(%arg0: i32) -> (i32, i32) {
    %c0_i32 = arith.constant 0 : i32
    %c0_i32_0 = arith.constant 0 : i32
    %c0_i32_1 = arith.constant 0 : i32
    return %c0_i32, %c0_i32_0 : i32, i32
  }
  func.func @transform_9(%arg0: i32) -> (i32, i32) {
    %c0_i32 = arith.constant 0 : i32
    %c0_i32_0 = arith.constant 0 : i32
    %c0_i32_1 = arith.constant 0 : i32
    return %c0_i32, %c0_i32_0 : i32, i32
  }
  func.func @transform_10(%arg0: i32) -> (i32, i32, i32) {
    %c0_i32 = arith.constant 0 : i32
    %c0_i32_0 = arith.constant 0 : i32
    %c0_i32_1 = arith.constant 0 : i32
    return %arg0, %c0_i32, %c0_i32_0 : i32, i32, i32
  }
}

</mosaic_0001>

<llo_original>
// kernel: tpu_custom_call.1
$region0: #{tpu_custom_call.1}
  #allocation0 [shape = 'u32[]', space=smem, size = 0x4, offset = 0x4, fixed_abs, tag = 'smem constant byte address 0x4 - core index']
  #allocation1 [shape = 'u32[144,128]{1,0:T(1,128)}', space=vmem, size = 0x12000, scoped, tag = 'internal scratch']
  %s0 = inlined_call_operand.hbm [shape: f32[2,8,16], index: 0, kind: input, shape index: {}]
  %s1 = inlined_call_operand.hbm [shape: f32[2,8,32], index: 1, kind: input, shape index: {}]
  %s2 = inlined_call_operand.hbm [shape: f32[16,32], index: 2, kind: input, shape index: {}]
  %s3 = inlined_call_operand.hbm [shape: f32[16,32], index: 3, kind: input, shape index: {}]
  %s4 = inlined_call_operand.hbm [shape: f32[32,32], index: 4, kind: input, shape index: {}]
  %s5 = inlined_call_operand.vmem [shape: f32[1,32], index: 5, kind: input, shape index: {}]
  %s6 = inlined_call_operand.hbm [shape: f32[32,32], index: 6, kind: input, shape index: {}]
  %s7 = inlined_call_operand.hbm [shape: f32[32,32], index: 7, kind: input, shape index: {}]
  %s8 = inlined_call_operand.hbm [shape: f32[32,32], index: 8, kind: input, shape index: {}]
  %s9 = inlined_call_operand.vmem [shape: f32[1,32], index: 9, kind: input, shape index: {}]
  %s10 = inlined_call_operand.hbm [shape: f32[2,8,32], index: 10, kind: output, shape index: {}]
  %s11 = sld [smem:[#allocation0]]
  $region105: #{tpu_custom_call.1} parent=0
    _
  %s13 = ssub.s32 1, %s11
  %s14 = scalar_select 0, %s13, %s11
  $region1: #{tpu_custom_call.1} parent=0
    #allocation2 [shape = 'u8[8192]{0}', space=vmem, size = 0x2000, scoped, tag = 'input window, operand 0']
    #allocation3 [shape = 's32[2]{0}', space=sflag, size = 0x8, scoped, tag = 'scoped memory for tpu_custom_call.1']
    #allocation4 [shape = 's32[2]{0}', space=sflag, size = 0x8, scoped, tag = 'scoped memory for tpu_custom_call.1']
    #allocation5 [shape = 'u8[8192]{0}', space=vmem, size = 0x2000, scoped, tag = 'input window, operand 1']
    #allocation6 [shape = 's32[2]{0}', space=sflag, size = 0x8, scoped, tag = 'scoped memory for tpu_custom_call.1']
    #allocation7 [shape = 'u8[8192]{0}', space=vmem, size = 0x2000, scoped, tag = 'input window, operand 2, single buffered']
    #allocation8 [shape = 'u8[8192]{0}', space=vmem, size = 0x2000, scoped, tag = 'input window, operand 3, single buffered']
    #allocation9 [shape = 's32[1]{0}', space=sflag, size = 0x4, scoped, tag = 'scoped memory for tpu_custom_call.1']
    #allocation10 [shape = 'u8[16384]{0}', space=vmem, size = 0x4000, scoped, tag = 'input window, operand 4, single buffered']
    #allocation11 [shape = 'u8[16384]{0}', space=vmem, size = 0x4000, scoped, tag = 'input window, operand 6, single buffered']
    #allocation12 [shape = 's32[1]{0}', space=sflag, size = 0x4, scoped, tag = 'scoped memory for tpu_custom_call.1']
    #allocation13 [shape = 'u8[16384]{0}', space=vmem, size = 0x4000, scoped, tag = 'input window, operand 7, single buffered']
    #allocation14 [shape = 'u8[16384]{0}', space=vmem, size = 0x4000, scoped, tag = 'input window, operand 8, single buffered']
    #allocation15 [shape = 's32[1]{0}', space=sflag, size = 0x4, scoped, tag = 'scoped memory for tpu_custom_call.1']
    #allocation16 [shape = 'u8[8192]{0}', space=vmem, size = 0x2000, scoped, tag = 'output window, operand 0']
    %15 = vsyncpa [#allocation3], 0
    %s16 = scalar_lea.sflag [#allocation3], 1
    %17 = vsyncpa %s16, 0
    %18 = vsyncpa [#allocation6], 0
    %s19 = scalar_lea.sflag [#allocation6], 1
    %20 = vsyncpa %s19, 0
    %21 = vsyncpa [#allocation9], 0
    %22 = vsyncpa [#allocation12], 0
    %23 = vsyncpa [#allocation15], 0
    %24 = vsyncpa [#allocation4], 0
    %s25 = scalar_lea.sflag [#allocation4], 1
    %26 = vsyncpa %s25, 0
    loop: start=0, step=1, limit=4
    $region2: #{tpu_custom_call.1} parent=1 // loop_pre_header
      _
    $region3: #{tpu_custom_call.1} parent=1 // loop_header
      %s28 = sphi 0, %s32
      %p29 = scmp.ge.s32.totalorder %s28, 4
      %s38 = sphi 0, %s40
      %s41 = sphi 0, %s38
      %s42 = sphi 0, %s41
      %s58 = sphi 0, %s42
      %s64 = sphi 0, %s66
      %s67 = sphi 0, %s64
      %s68 = sphi 0, %s67
      %s84 = sphi 0, %s68
      %s88 = sphi 0, %s88
      %s90 = sphi 0, %s88
      %s91 = sphi 0, %s90
      %s105 = sphi 0, %s91
      %s109 = sphi 0, %s109
      %s111 = sphi 0, %s109
      %s112 = sphi 0, %s111
      %s126 = sphi 0, %s112
      %s130 = sphi 0, %s130
      %s132 = sphi 0, %s130
      %s133 = sphi 0, %s132
      %s147 = sphi 0, %s133
      %s151 = sphi 0, %s151
      %s153 = sphi 0, %s151
      %s154 = sphi 0, %s153
      %s168 = sphi 0, %s154
      %s172 = sphi 0, %s172
      %s174 = sphi 0, %s172
      %s175 = sphi 0, %s174
      %s189 = sphi 0, %s175
      %s193 = sphi 0, %s193
      %s195 = sphi 0, %s193
      %s196 = sphi 0, %s195
      %s210 = sphi 0, %s196
      %s214 = sphi 0, %s214
      %s216 = sphi 0, %s214
      %s217 = sphi 0, %s216
      %s231 = sphi 0, %s217
      %s235 = sphi 0, %s235
      %s237 = sphi 0, %s235
      %s238 = sphi 0, %s237
      %s252 = sphi 0, %s238
      %s258 = sphi 0, %s260
      %s261 = sphi 0, %s258
      %s262 = sphi 0, %s261
      %s278 = sphi 0, %s262
    $region4: #{tpu_custom_call.1} parent=1 // loop_header_branch
      %31 = sbr.rel (%p29) target = $region8
    $region5: #{tpu_custom_call.1} parent=1 // loop_body
      %s33 = ssub.s32 %s28, 1
      %s34 = ssub.s32 %s28, 2
      %s35 = sadd.s32 %s28, 1
      %s36 = ssub.s32 %s28, %s35
      %p37 = scmp.eq.s32.totalorder %s36, 0
      %s39 = sadd.s32 %s38, 1
      %s40 = scalar_select %p37, %s38, %s39
      %p43 = pneg %p37
      %p44 = scmp.eq.s32.totalorder %s28, 1
      %p45 = por %p43, %p44
      %p46 = scmp.ne.s32.totalorder %s38, %s41
      %p47 = scmp.eq.s32.totalorder %s28, 0
      %p48 = por %p46, %p47
      %p49 = scmp.ne.s32.totalorder %s38, %s41
      %p50 = scmp.eq.s32.totalorder %s33, 1
      %p51 = por %p49, %p50
      %p52 = scmp.ne.s32.totalorder %s41, %s42
      %p53 = scmp.eq.s32.totalorder %s33, 0
      %p54 = por %p52, %p53
      %p55 = scmp.ne.s32.totalorder %s41, %s42
      %p56 = scmp.eq.s32.totalorder %s34, 1
      %p57 = por %p55, %p56
      %p59 = scmp.ne.s32.totalorder %s42, %s58
      %p60 = scmp.eq.s32.totalorder %s34, 0
      %p61 = por %p59, %p60
      %s62 = ssub.s32 %s28, %s35
      %p63 = scmp.eq.s32.totalorder %s62, 0
      %s65 = sadd.s32 %s64, 1
      %s66 = scalar_select %p63, %s64, %s65
      %p69 = pneg %p63
      %p70 = scmp.eq.s32.totalorder %s28, 1
      %p71 = por %p69, %p70
      %p72 = scmp.ne.s32.totalorder %s64, %s67
      %p73 = scmp.eq.s32.totalorder %s28, 0
      %p74 = por %p72, %p73
      %p75 = scmp.ne.s32.totalorder %s64, %s67
      %p76 = scmp.eq.s32.totalorder %s33, 1
      %p77 = por %p75, %p76
      %p78 = scmp.ne.s32.totalorder %s67, %s68
      %p79 = scmp.eq.s32.totalorder %s33, 0
      %p80 = por %p78, %p79
      %p81 = scmp.ne.s32.totalorder %s67, %s68
      %p82 = scmp.eq.s32.totalorder %s34, 1
      %p83 = por %p81, %p82
      %p85 = scmp.ne.s32.totalorder %s68, %s84
      %p86 = scmp.eq.s32.totalorder %s34, 0
      %p87 = por %p85, %p86
      %s89 = sadd.s32 %s88, 1
      %p92 = scmp.eq.s32.totalorder %s28, 1
      %p93 = scmp.ne.s32.totalorder %s88, %s90
      %p94 = scmp.eq.s32.totalorder %s28, 0
      %p95 = por %p93, %p94
      %p96 = scmp.ne.s32.totalorder %s88, %s90
      %p97 = scmp.eq.s32.totalorder %s33, 1
      %p98 = por %p96, %p97
      %p99 = scmp.ne.s32.totalorder %s90, %s91
      %p100 = scmp.eq.s32.totalorder %s33, 0
      %p101 = por %p99, %p100
      %p102 = scmp.ne.s32.totalorder %s90, %s91
      %p103 = scmp.eq.s32.totalorder %s34, 1
      %p104 = por %p102, %p103
      %p106 = scmp.ne.s32.totalorder %s91, %s105
      %p107 = scmp.eq.s32.totalorder %s34, 0
      %p108 = por %p106, %p107
      %s110 = sadd.s32 %s109, 1
      %p113 = scmp.eq.s32.totalorder %s28, 1
      %p114 = scmp.ne.s32.totalorder %s109, %s111
      %p115 = scmp.eq.s32.totalorder %s28, 0
      %p116 = por %p114, %p115
      %p117 = scmp.ne.s32.totalorder %s109, %s111
      %p118 = scmp.eq.s32.totalorder %s33, 1
      %p119 = por %p117, %p118
      %p120 = scmp.ne.s32.totalorder %s111, %s112
      %p121 = scmp.eq.s32.totalorder %s33, 0
      %p122 = por %p120, %p121
      %p123 = scmp.ne.s32.totalorder %s111, %s112
      %p124 = scmp.eq.s32.totalorder %s34, 1
      %p125 = por %p123, %p124
      %p127 = scmp.ne.s32.totalorder %s112, %s126
      %p128 = scmp.eq.s32.totalorder %s34, 0
      %p129 = por %p127, %p128
      %s131 = sadd.s32 %s130, 1
      %p134 = scmp.eq.s32.totalorder %s28, 1
      %p135 = scmp.ne.s32.totalorder %s130, %s132
      %p136 = scmp.eq.s32.totalorder %s28, 0
      %p137 = por %p135, %p136
      %p138 = scmp.ne.s32.totalorder %s130, %s132
      %p139 = scmp.eq.s32.totalorder %s33, 1
      %p140 = por %p138, %p139
      %p141 = scmp.ne.s32.totalorder %s132, %s133
      %p142 = scmp.eq.s32.totalorder %s33, 0
      %p143 = por %p141, %p142
      %p144 = scmp.ne.s32.totalorder %s132, %s133
      %p145 = scmp.eq.s32.totalorder %s34, 1
      %p146 = por %p144, %p145
      %p148 = scmp.ne.s32.totalorder %s133, %s147
      %p149 = scmp.eq.s32.totalorder %s34, 0
      %p150 = por %p148, %p149
      %s152 = sadd.s32 %s151, 1
      %p155 = scmp.eq.s32.totalorder %s28, 1
      %p156 = scmp.ne.s32.totalorder %s151, %s153
      %p157 = scmp.eq.s32.totalorder %s28, 0
      %p158 = por %p156, %p157
      %p159 = scmp.ne.s32.totalorder %s151, %s153
      %p160 = scmp.eq.s32.totalorder %s33, 1
      %p161 = por %p159, %p160
      %p162 = scmp.ne.s32.totalorder %s153, %s154
      %p163 = scmp.eq.s32.totalorder %s33, 0
      %p164 = por %p162, %p163
      %p165 = scmp.ne.s32.totalorder %s153, %s154
      %p166 = scmp.eq.s32.totalorder %s34, 1
      %p167 = por %p165, %p166
      %p169 = scmp.ne.s32.totalorder %s154, %s168
      %p170 = scmp.eq.s32.totalorder %s34, 0
      %p171 = por %p169, %p170
      %s173 = sadd.s32 %s172, 1
      %p176 = scmp.eq.s32.totalorder %s28, 1
      %p177 = scmp.ne.s32.totalorder %s172, %s174
      %p178 = scmp.eq.s32.totalorder %s28, 0
      %p179 = por %p177, %p178
      %p180 = scmp.ne.s32.totalorder %s172, %s174
      %p181 = scmp.eq.s32.totalorder %s33, 1
      %p182 = por %p180, %p181
      %p183 = scmp.ne.s32.totalorder %s174, %s175
      %p184 = scmp.eq.s32.totalorder %s33, 0
      %p185 = por %p183, %p184
      %p186 = scmp.ne.s32.totalorder %s174, %s175
      %p187 = scmp.eq.s32.totalorder %s34, 1
      %p188 = por %p186, %p187
      %p190 = scmp.ne.s32.totalorder %s175, %s189
      %p191 = scmp.eq.s32.totalorder %s34, 0
      %p192 = por %p190, %p191
      %s194 = sadd.s32 %s193, 1
      %p197 = scmp.eq.s32.totalorder %s28, 1
      %p198 = scmp.ne.s32.totalorder %s193, %s195
      %p199 = scmp.eq.s32.totalorder %s28, 0
      %p200 = por %p198, %p199
      %p201 = scmp.ne.s32.totalorder %s193, %s195
      %p202 = scmp.eq.s32.totalorder %s33, 1
      %p203 = por %p201, %p202
      %p204 = scmp.ne.s32.totalorder %s195, %s196
      %p205 = scmp.eq.s32.totalorder %s33, 0
      %p206 = por %p204, %p205
      %p207 = scmp.ne.s32.totalorder %s195, %s196
      %p208 = scmp.eq.s32.totalorder %s34, 1
      %p209 = por %p207, %p208
      %p211 = scmp.ne.s32.totalorder %s196, %s210
      %p212 = scmp.eq.s32.totalorder %s34, 0
      %p213 = por %p211, %p212
      %s215 = sadd.s32 %s214, 1
      %p218 = scmp.eq.s32.totalorder %s28, 1
      %p219 = scmp.ne.s32.totalorder %s214, %s216
      %p220 = scmp.eq.s32.totalorder %s28, 0
      %p221 = por %p219, %p220
      %p222 = scmp.ne.s32.totalorder %s214, %s216
      %p223 = scmp.eq.s32.totalorder %s33, 1
      %p224 = por %p222, %p223
      %p225 = scmp.ne.s32.totalorder %s216, %s217
      %p226 = scmp.eq.s32.totalorder %s33, 0
      %p227 = por %p225, %p226
      %p228 = scmp.ne.s32.totalorder %s216, %s217
      %p229 = scmp.eq.s32.totalorder %s34, 1
      %p230 = por %p228, %p229
      %p232 = scmp.ne.s32.totalorder %s217, %s231
      %p233 = scmp.eq.s32.totalorder %s34, 0
      %p234 = por %p232, %p233
      %s236 = sadd.s32 %s235, 1
      %p239 = scmp.eq.s32.totalorder %s28, 1
      %p240 = scmp.ne.s32.totalorder %s235, %s237
      %p241 = scmp.eq.s32.totalorder %s28, 0
      %p242 = por %p240, %p241
      %p243 = scmp.ne.s32.totalorder %s235, %s237
      %p244 = scmp.eq.s32.totalorder %s33, 1
      %p245 = por %p243, %p244
      %p246 = scmp.ne.s32.totalorder %s237, %s238
      %p247 = scmp.eq.s32.totalorder %s33, 0
      %p248 = por %p246, %p247
      %p249 = scmp.ne.s32.totalorder %s237, %s238
      %p250 = scmp.eq.s32.totalorder %s34, 1
      %p251 = por %p249, %p250
      %p253 = scmp.ne.s32.totalorder %s238, %s252
      %p254 = scmp.eq.s32.totalorder %s34, 0
      %p255 = por %p253, %p254
      %s256 = ssub.s32 %s28, %s35
      %p257 = scmp.eq.s32.totalorder %s256, 0
      %s259 = sadd.s32 %s258, 1
      %s260 = scalar_select %p257, %s258, %s259
      %p263 = pneg %p257
      %p264 = scmp.eq.s32.totalorder %s28, 1
      %p265 = por %p263, %p264
      %p266 = scmp.ne.s32.totalorder %s258, %s261
      %p267 = scmp.eq.s32.totalorder %s28, 0
      %p268 = por %p266, %p267
      %p269 = scmp.ne.s32.totalorder %s258, %s261
      %p270 = scmp.eq.s32.totalorder %s33, 1
      %p271 = por %p269, %p270
      %p272 = scmp.ne.s32.totalorder %s261, %s262
      %p273 = scmp.eq.s32.totalorder %s33, 0
      %p274 = por %p272, %p273
      %p275 = scmp.ne.s32.totalorder %s261, %s262
      %p276 = scmp.eq.s32.totalorder %s34, 1
      %p277 = por %p275, %p276
      %p279 = scmp.ne.s32.totalorder %s262, %s278
      %p280 = scmp.eq.s32.totalorder %s34, 0
      %p281 = por %p279, %p280
      %p282 = scmp.le.s32.totalorder 1, %s28
      %p283 = scmp.lt.s32.totalorder %s28, 3
      %p284 = pnand %p282, %p283
      %p285 = pneg %p284
      // Predicated region
      $region9: #{tpu_custom_call.1} parent=5 // pred_check
        _
      $region10: #{tpu_custom_call.1} parent=5 // pred_check_branch
        %287 = sbr.rel (%p284) target = $region12
      $region11: #{tpu_custom_call.1} parent=5 // pred_region
        %s288 = ssub.s32 %s28, 1
        // Predicated region
        $region13: #{tpu_custom_call.1} parent=11 // pred_check
          %p289 = pneg %p101
        $region14: #{tpu_custom_call.1} parent=11 // pred_check_branch
          %291 = sbr.rel (%p289) target = $region16
        $region15: #{tpu_custom_call.1} parent=11 // pred_region
          %s293 = ssub.s32 256, 256
          %294 = vsyncadd [#allocation6], %s293
          %s295 = sshll.u32 [#allocation7], 4
          %s296 = int_to_ptr.vmem [resolvable:$true] %s295
          %301 = dma.hbm_to_vmem [thread:$0]  %s2, 256, %s296, [#allocation6], 128, 128, 8
        $region16: #{tpu_custom_call.1} parent=11 // pred_fallthru
          _
        // Predicated region
        $region17: #{tpu_custom_call.1} parent=11 // pred_check
          %p302 = pneg %p122
        $region18: #{tpu_custom_call.1} parent=11 // pred_check_branch
          %304 = sbr.rel (%p302) target = $region20
        $region19: #{tpu_custom_call.1} parent=11 // pred_region
          %s306 = ssub.s32 256, 256
          %307 = vsyncadd [#allocation9], %s306
          %s308 = sshll.u32 [#allocation8], 4
          %s309 = int_to_ptr.vmem [resolvable:$true] %s308
          %314 = dma.hbm_to_vmem [thread:$0]  %s3, 256, %s309, [#allocation9], 128, 128, 8
        $region20: #{tpu_custom_call.1} parent=11 // pred_fallthru
          _
        // Predicated region
        $region21: #{tpu_custom_call.1} parent=11 // pred_check
          %p315 = pneg %p143
        $region22: #{tpu_custom_call.1} parent=11 // pred_check_branch
          %317 = sbr.rel (%p315) target = $region24
        $region23: #{tpu_custom_call.1} parent=11 // pred_region
          %s319 = ssub.s32 512, 512
          %320 = vsyncadd [#allocation9], %s319
          %s321 = sshll.u32 [#allocation10], 4
          %s322 = int_to_ptr.vmem [resolvable:$true] %s321
          %327 = dma.hbm_to_vmem [thread:$0]  %s4, 512, %s322, [#allocation9], 128, 128, 8
        $region24: #{tpu_custom_call.1} parent=11 // pred_fallthru
          _
        // Predicated region
        $region25: #{tpu_custom_call.1} parent=11 // pred_check
          %p328 = pneg %p164
        $region26: #{tpu_custom_call.1} parent=11 // pred_check_branch
          %330 = sbr.rel (%p328) target = $region28
        $region27: #{tpu_custom_call.1} parent=11 // pred_region
          _
        $region28: #{tpu_custom_call.1} parent=11 // pred_fallthru
          _
        // Predicated region
        $region29: #{tpu_custom_call.1} parent=11 // pred_check
          %p331 = pneg %p185
        $region30: #{tpu_custom_call.1} parent=11 // pred_check_branch
          %333 = sbr.rel (%p331) target = $region32
        $region31: #{tpu_custom_call.1} parent=11 // pred_region
          %s335 = ssub.s32 512, 512
          %336 = vsyncadd [#allocation12], %s335
          %s337 = sshll.u32 [#allocation11], 4
          %s338 = int_to_ptr.vmem [resolvable:$true] %s337
          %343 = dma.hbm_to_vmem [thread:$0]  %s6, 512, %s338, [#allocation12], 128, 128, 8
        $region32: #{tpu_custom_call.1} parent=11 // pred_fallthru
          _
        // Predicated region
        $region33: #{tpu_custom_call.1} parent=11 // pred_check
          %p344 = pneg %p206
        $region34: #{tpu_custom_call.1} parent=11 // pred_check_branch
          %346 = sbr.rel (%p344) target = $region36
        $region35: #{tpu_custom_call.1} parent=11 // pred_region
          %s348 = ssub.s32 512, 512
          %349 = vsyncadd [#allocation12], %s348
          %s350 = sshll.u32 [#allocation13], 4
          %s351 = int_to_ptr.vmem [resolvable:$true] %s350
          %356 = dma.hbm_to_vmem [thread:$0]  %s7, 512, %s351, [#allocation12], 128, 128, 8
        $region36: #{tpu_custom_call.1} parent=11 // pred_fallthru
          _
        // Predicated region
        $region37: #{tpu_custom_call.1} parent=11 // pred_check
          %p357 = pneg %p227
        $region38: #{tpu_custom_call.1} parent=11 // pred_check_branch
          %359 = sbr.rel (%p357) target = $region40
        $region39: #{tpu_custom_call.1} parent=11 // pred_region
          %s361 = ssub.s32 512, 512
          %362 = vsyncadd [#allocation15], %s361
          %s363 = sshll.u32 [#allocation14], 4
          %s364 = int_to_ptr.vmem [resolvable:$true] %s363
          %369 = dma.hbm_to_vmem [thread:$0]  %s8, 512, %s364, [#allocation15], 128, 128, 8
        $region40: #{tpu_custom_call.1} parent=11 // pred_fallthru
          _
        // Predicated region
        $region41: #{tpu_custom_call.1} parent=11 // pred_check
          %p370 = pneg %p248
        $region42: #{tpu_custom_call.1} parent=11 // pred_check_branch
          %372 = sbr.rel (%p370) target = $region44
        $region43: #{tpu_custom_call.1} parent=11 // pred_region
          _
        $region44: #{tpu_custom_call.1} parent=11 // pred_fallthru
          _
      $region12: #{tpu_custom_call.1} parent=5 // pred_fallthru
        _
      %p373 = scmp.lt.s32.totalorder %s28, 2
      // Predicated region
      $region45: #{tpu_custom_call.1} parent=5 // pred_check
        %p374 = pneg %p373
      $region46: #{tpu_custom_call.1} parent=5 // pred_check_branch
        %376 = sbr.rel (%p374) target = $region48
      $region47: #{tpu_custom_call.1} parent=5 // pred_region
        // Predicated region
        $region49: #{tpu_custom_call.1} parent=47 // pred_check
          %p377 = pneg %p48
        $region50: #{tpu_custom_call.1} parent=47 // pred_check_branch
          %379 = sbr.rel (%p377) target = $region52
        $region51: #{tpu_custom_call.1} parent=47 // pred_region
          %s380 = sand.u32 %s38, 1
          %s381 = scalar_lea.sflag [#allocation3], %s380
          %s382 = sand.u32 %s38, 1
          %s383 = smul.addr %s382, 8
          %s384 = scalar_lea.vmem [#allocation2], %s383
          %s386 = ssub.s32 128, 128
          %387 = vsyncadd %s381, %s386
          %s388 = smul.addr %s28, 128
          %s389 = scalar_lea.hbm %s0, %s388
          %s391 = sshll.u32 %s384, 4
          %s392 = int_to_ptr.vmem [resolvable:$true] %s391
          %394 = dma.hbm_to_vmem [thread:$0]  %s389, 128, %s392, %s381
        $region52: #{tpu_custom_call.1} parent=47 // pred_fallthru
          _
        // Predicated region
        $region53: #{tpu_custom_call.1} parent=47 // pred_check
          %p395 = pneg %p74
        $region54: #{tpu_custom_call.1} parent=47 // pred_check_branch
          %397 = sbr.rel (%p395) target = $region56
        $region55: #{tpu_custom_call.1} parent=47 // pred_region
          %s398 = sand.u32 %s28, 1
          %s399 = scalar_lea.sflag [#allocation6], %s398
          %s400 = sand.u32 %s64, 1
          %s401 = smul.addr %s400, 8
          %s402 = scalar_lea.vmem [#allocation5], %s401
          %s404 = ssub.s32 128, 128
          %405 = vsyncadd %s399, %s404
          %s406 = smul.addr %s28, 128
          %s407 = scalar_lea.hbm %s1, %s406
          %s409 = sshll.u32 %s402, 4
          %s410 = int_to_ptr.vmem [resolvable:$true] %s409
          %412 = dma.hbm_to_vmem [thread:$0]  %s407, 128, %s410, %s399
        $region56: #{tpu_custom_call.1} parent=47 // pred_fallthru
          _
      $region48: #{tpu_custom_call.1} parent=5 // pred_fallthru
        _
      %p413 = scmp.le.s32.totalorder 1, %s28
      %p414 = scmp.lt.s32.totalorder %s28, 3
      %p415 = pnand %p413, %p414
      %p416 = pneg %p415
      // Predicated region
      $region57: #{tpu_custom_call.1} parent=5 // pred_check
        _
      $region58: #{tpu_custom_call.1} parent=5 // pred_check_branch
        %418 = sbr.rel (%p415) target = $region60
      $region59: #{tpu_custom_call.1} parent=5 // pred_region
        %s419 = ssub.s32 %s28, 1
        %s420 = sand.u32 %s41, 1
        %s421 = scalar_lea.sflag [#allocation3], %s420
        %s422 = sand.u32 %s41, 1
        %s423 = smul.addr %s422, 8
        %s424 = scalar_lea.vmem [#allocation2], %s423
        // Predicated region
        $region61: #{tpu_custom_call.1} parent=59 // pred_check
          %p425 = pneg %p54
        $region62: #{tpu_custom_call.1} parent=59 // pred_check_branch
          %427 = sbr.rel (%p425) target = $region64
        $region63: #{tpu_custom_call.1} parent=59 // pred_region
          %428 = dma.done %s421, 128
        $region64: #{tpu_custom_call.1} parent=59 // pred_fallthru
          _
        %s429 = sand.u32 %s33, 1
        %s430 = scalar_lea.sflag [#allocation6], %s429
        %s431 = sand.u32 %s67, 1
        %s432 = smul.addr %s431, 8
        %s433 = scalar_lea.vmem [#allocation5], %s432
        // Predicated region
        $region65: #{tpu_custom_call.1} parent=59 // pred_check
          %p434 = pneg %p80
        $region66: #{tpu_custom_call.1} parent=59 // pred_check_branch
          %436 = sbr.rel (%p434) target = $region68
        $region67: #{tpu_custom_call.1} parent=59 // pred_region
          %437 = dma.done %s430, 128
        $region68: #{tpu_custom_call.1} parent=59 // pred_fallthru
          _
        // Predicated region
        $region69: #{tpu_custom_call.1} parent=59 // pred_check
          %p438 = pneg %p101
        $region70: #{tpu_custom_call.1} parent=59 // pred_check_branch
          %440 = sbr.rel (%p438) target = $region72
        $region71: #{tpu_custom_call.1} parent=59 // pred_region
          %441 = dma.done [#allocation6], 256
        $region72: #{tpu_custom_call.1} parent=59 // pred_fallthru
          _
        // Predicated region
        $region73: #{tpu_custom_call.1} parent=59 // pred_check
          %p442 = pneg %p122
        $region74: #{tpu_custom_call.1} parent=59 // pred_check_branch
          %444 = sbr.rel (%p442) target = $region76
        $region75: #{tpu_custom_call.1} parent=59 // pred_region
          %445 = dma.done [#allocation9], 256
        $region76: #{tpu_custom_call.1} parent=59 // pred_fallthru
          _
        // Predicated region
        $region77: #{tpu_custom_call.1} parent=59 // pred_check
          %p446 = pneg %p143
        $region78: #{tpu_custom_call.1} parent=59 // pred_check_branch
          %448 = sbr.rel (%p446) target = $region80
        $region79: #{tpu_custom_call.1} parent=59 // pred_region
          %449 = dma.done [#allocation9], 512
        $region80: #{tpu_custom_call.1} parent=59 // pred_fallthru
          _
        // Predicated region
        $region81: #{tpu_custom_call.1} parent=59 // pred_check
          %p450 = pneg %p185
        $region82: #{tpu_custom_call.1} parent=59 // pred_check_branch
          %452 = sbr.rel (%p450) target = $region84
        $region83: #{tpu_custom_call.1} parent=59 // pred_region
          %453 = dma.done [#allocation12], 512
        $region84: #{tpu_custom_call.1} parent=59 // pred_fallthru
          _
        // Predicated region
        $region85: #{tpu_custom_call.1} parent=59 // pred_check
          %p454 = pneg %p206
        $region86: #{tpu_custom_call.1} parent=59 // pred_check_branch
          %456 = sbr.rel (%p454) target = $region88
        $region87: #{tpu_custom_call.1} parent=59 // pred_region
          %457 = dma.done [#allocation12], 512
        $region88: #{tpu_custom_call.1} parent=59 // pred_fallthru
          _
        // Predicated region
        $region89: #{tpu_custom_call.1} parent=59 // pred_check
          %p458 = pneg %p227
        $region90: #{tpu_custom_call.1} parent=59 // pred_check_branch
          %460 = sbr.rel (%p458) target = $region92
        $region91: #{tpu_custom_call.1} parent=59 // pred_region
          %461 = dma.done [#allocation15], 512
        $region92: #{tpu_custom_call.1} parent=59 // pred_fallthru
          _
        %s462 = sand.u32 %s41, 1
        %s463 = scalar_lea.sflag [#allocation3], %s462
        %s464 = sand.u32 %s41, 1
        %s465 = smul.addr %s464, 8
        %s466 = scalar_lea.vmem [#allocation2], %s465
        %p467 = pneg %p54
        %p468 = pneg %p51
        %s469 = sand.u32 %s33, 1
        %s470 = scalar_lea.sflag [#allocation6], %s469
        %s471 = sand.u32 %s67, 1
        %s472 = smul.addr %s471, 8
        %s473 = scalar_lea.vmem [#allocation5], %s472
        %p474 = pneg %p80
        %p475 = pneg %p77
        %p476 = pneg %p101
        %p477 = pneg %p98
        %p478 = pneg %p122
        %p479 = pneg %p119
        %p480 = pneg %p143
        %p481 = pneg %p140
        %p482 = pneg %p164
        %p483 = pneg %p161
        %p484 = pneg %p185
        %p485 = pneg %p182
        %p486 = pneg %p206
        %p487 = pneg %p203
        %p488 = pneg %p227
        %p489 = pneg %p224
        %p490 = pneg %p248
        %p491 = pneg %p245
        %p492 = pneg %p274
        %p493 = pneg %p271
        %s494 = sand.u32 %s261, 1
        %s495 = scalar_lea.sflag [#allocation4], %s494
        %s496 = sand.u32 %s261, 1
        %s497 = smul.addr %s496, 8
        %s498 = scalar_lea.vmem [#allocation16], %s497
        %v499 = vld [vmem:[%s424] sm:$0xff]
        %v500 = vld [vmem:[%s433] sm:$0xff]
        %v501 = vlaneseq
        %v502 = vshrl.u32 %v501, 7
        %vm503 = vcmp.eq.s32.totalorder %v502, 7
        %v504 = vrot.slane %v499, 1
        %v505 = vsel %vm503, 0.0, %v504
        %v506 = vld [vmem:[#allocation7] sm:$0xff]
        %v507 = vld [vmem:[#allocation7 + $0x8] sm:$0xff]
        %v508 = vld [vmem:[#allocation8] sm:$0xff]
        %v509 = vld [vmem:[#allocation8 + $0x8] sm:$0xff]
        %vm510 = vcmask 130048
        %v512 = vsel %vm510, %v505, 0
        %514 = vmatprep.subr.mxu0 0.0
        %515 = vmatpush1.msra.mxu0 %v508
        %516 = vmatprep.subr.mxu0 0.0
        %517 = vmatpush1.msra.mxu0 %v509
        %518 = vmatprep.subr.mxu0 0.0
        %519 = vmatpush1.msra.mxu0 0.0
        %520 = vmatprep.subr.mxu0 0.0
        %521 = vmatpush1.msra.mxu0 0.0
        %522 = vmatprep.subr.mxu0 0.0
        %523 = vmatpush1.msra.mxu0 0.0
        %524 = vmatprep.subr.mxu0 0.0
        %525 = vmatpush1.msra.mxu0 0.0
        %526 = vmatprep.subr.mxu0 0.0
        %527 = vmatpush1.msra.mxu0 0.0
        %528 = vmatprep.subr.mxu0 0.0
        %529 = vmatpush1.msra.mxu0 0.0
        %530 = vmatprep.subr.mxu0 0.0
        %531 = vmatpush1.msra.mxu0 0.0
        %532 = vmatprep.subr.mxu0 0.0
        %533 = vmatpush1.msra.mxu0 0.0
        %534 = vmatprep.subr.mxu0 0.0
        %535 = vmatpush1.msra.mxu0 0.0
        %536 = vmatprep.subr.mxu0 0.0
        %537 = vmatpush1.msra.mxu0 0.0
        %538 = vmatprep.subr.mxu0 0.0
        %539 = vmatpush1.msra.mxu0 0.0
        %540 = vmatprep.subr.mxu0 0.0
        %541 = vmatpush1.msra.mxu0 0.0
        %542 = vmatprep.subr.mxu0 0.0
        %543 = vmatpush1.msra.mxu0 0.0
        %544 = vmatprep.subr.mxu0 0.0
        %545 = vmatpush1.msra.mxu0 0.0
        %546 = vmatprep.subr.mxu0 0.0
        %547 = vmatpush1.msra.mxu0 0.0
        %548 = vmatprep.subr.mxu0 0.0
        %549 = vmatpush1.msra.mxu0 0.0
        %550 = vmatprep.subr.mxu0 0.0
        %551 = vmatpush1.msra.mxu0 0.0
        %552 = vmatprep.subr.mxu0 0.0
        %553 = vmatpush1.msra.mxu0 0.0
        %554 = vmatprep.subr.mxu0 0.0
        %555 = vmatpush1.msra.mxu0 0.0
        %556 = vmatprep.subr.mxu0 0.0
        %557 = vmatpush1.msra.mxu0 0.0
        %558 = vmatprep.subr.mxu0 0.0
        %559 = vmatpush1.msra.mxu0 0.0
        %560 = vmatprep.subr.mxu0 0.0
        %561 = vmatpush1.msra.mxu0 0.0
        %562 = vmatprep.subr.mxu0 0.0
        %563 = vmatpush1.msra.mxu0 0.0
        %564 = vmatprep.subr.mxu0 0.0
        %565 = vmatpush1.msra.mxu0 0.0
        %566 = vmatprep.subr.mxu0 0.0
        %567 = vmatpush1.msra.mxu0 0.0
        %568 = vmatprep.subr.mxu0 0.0
        %569 = vmatpush1.msra.mxu0 0.0
        %570 = vmatprep.subr.mxu0 0.0
        %571 = vmatpush1.msra.mxu0 0.0
        %572 = vmatprep.subr.mxu0 0.0
        %573 = vmatpush1.msra.mxu0 0.0
        %574 = vmatprep.subr.mxu0 0.0
        %575 = vmatpush1.msra.mxu0 0.0
        %576 = vmatprep.subr.mxu0 0.0
        %577 = vmatpush1.msra.mxu0 0.0
        %578 = vmatprep.mubr.f32.mxu0 0.0
        %579 = vmatmul.mubr.f32.gmra.mrb[0].mxu0 %v512
        %v580 = vpop.f32.mrb[0].mxu0
        %v581 = vadd.f32 0.0, %v580
        %v582 = vpop.f32.mrb[0].mxu0
        %583 = vdwg.mxu0
        %v585 = vsel %vm510, %v499, 0
        %587 = vmatprep.subr.mxu0 0.0
        %588 = vmatpush1.msra.mxu0 %v506
        %589 = vmatprep.subr.mxu0 0.0
        %590 = vmatpush1.msra.mxu0 %v507
        %591 = vmatprep.subr.mxu0 0.0
        %592 = vmatpush1.msra.mxu0 0.0
        %593 = vmatprep.subr.mxu0 0.0
        %594 = vmatpush1.msra.mxu0 0.0
        %595 = vmatprep.subr.mxu0 0.0
        %596 = vmatpush1.msra.mxu0 0.0
        %597 = vmatprep.subr.mxu0 0.0
        %598 = vmatpush1.msra.mxu0 0.0
        %599 = vmatprep.subr.mxu0 0.0
        %600 = vmatpush1.msra.mxu0 0.0
        %601 = vmatprep.subr.mxu0 0.0
        %602 = vmatpush1.msra.mxu0 0.0
        %603 = vmatprep.subr.mxu0 0.0
        %604 = vmatpush1.msra.mxu0 0.0
        %605 = vmatprep.subr.mxu0 0.0
        %606 = vmatpush1.msra.mxu0 0.0
        %607 = vmatprep.subr.mxu0 0.0
        %608 = vmatpush1.msra.mxu0 0.0
        %609 = vmatprep.subr.mxu0 0.0
        %610 = vmatpush1.msra.mxu0 0.0
        %611 = vmatprep.subr.mxu0 0.0
        %612 = vmatpush1.msra.mxu0 0.0
        %613 = vmatprep.subr.mxu0 0.0
        %614 = vmatpush1.msra.mxu0 0.0
        %615 = vmatprep.subr.mxu0 0.0
        %616 = vmatpush1.msra.mxu0 0.0
        %617 = vmatprep.subr.mxu0 0.0
        %618 = vmatpush1.msra.mxu0 0.0
        %619 = vmatprep.subr.mxu0 0.0
        %620 = vmatpush1.msra.mxu0 0.0
        %621 = vmatprep.subr.mxu0 0.0
        %622 = vmatpush1.msra.mxu0 0.0
        %623 = vmatprep.subr.mxu0 0.0
        %624 = vmatpush1.msra.mxu0 0.0
        %625 = vmatprep.subr.mxu0 0.0
        %626 = vmatpush1.msra.mxu0 0.0
        %627 = vmatprep.subr.mxu0 0.0
        %628 = vmatpush1.msra.mxu0 0.0
        %629 = vmatprep.subr.mxu0 0.0
        %630 = vmatpush1.msra.mxu0 0.0
        %631 = vmatprep.subr.mxu0 0.0
        %632 = vmatpush1.msra.mxu0 0.0
        %633 = vmatprep.subr.mxu0 0.0
        %634 = vmatpush1.msra.mxu0 0.0
        %635 = vmatprep.subr.mxu0 0.0
        %636 = vmatpush1.msra.mxu0 0.0
        %637 = vmatprep.subr.mxu0 0.0
        %638 = vmatpush1.msra.mxu0 0.0
        %639 = vmatprep.subr.mxu0 0.0
        %640 = vmatpush1.msra.mxu0 0.0
        %641 = vmatprep.subr.mxu0 0.0
        %642 = vmatpush1.msra.mxu0 0.0
        %643 = vmatprep.subr.mxu0 0.0
        %644 = vmatpush1.msra.mxu0 0.0
        %645 = vmatprep.subr.mxu0 0.0
        %646 = vmatpush1.msra.mxu0 0.0
        %647 = vmatprep.subr.mxu0 0.0
        %648 = vmatpush1.msra.mxu0 0.0
        %649 = vmatprep.subr.mxu0 0.0
        %650 = vmatpush1.msra.mxu0 0.0
        %651 = vmatprep.mubr.f32.mxu0 0.0
        %652 = vmatmul.mubr.f32.gmra.mrb[0].mxu0 %v585
        %v653 = vpop.f32.mrb[0].mxu0
        %v654 = vadd.f32 %v581, %v653
        %v655 = vpop.f32.mrb[0].mxu0
        %656 = vdwg.mxu0
        %v657 = vld [vmem:[#allocation10] sm:$0xff]
        %v658 = vld [vmem:[#allocation10 + $0x8] sm:$0xff]
        %v659 = vld [vmem:[#allocation10 + $0x10] sm:$0xff]
        %v660 = vld [vmem:[#allocation10 + $0x18] sm:$0xff]
        %vm661 = vcmask 261120
        %v663 = vsel %vm661, %v500, 0
        %665 = vmatprep.subr.mxu0 0.0
        %666 = vmatpush1.msra.mxu0 %v657
        %667 = vmatprep.subr.mxu0 0.0
        %668 = vmatpush1.msra.mxu0 %v658
        %669 = vmatprep.subr.mxu0 0.0
        %670 = vmatpush1.msra.mxu0 %v659
        %671 = vmatprep.subr.mxu0 0.0
        %672 = vmatpush1.msra.mxu0 %v660
        %673 = vmatprep.subr.mxu0 0.0
        %674 = vmatpush1.msra.mxu0 0.0
        %675 = vmatprep.subr.mxu0 0.0
        %676 = vmatpush1.msra.mxu0 0.0
        %677 = vmatprep.subr.mxu0 0.0
        %678 = vmatpush1.msra.mxu0 0.0
        %679 = vmatprep.subr.mxu0 0.0
        %680 = vmatpush1.msra.mxu0 0.0
        %681 = vmatprep.subr.mxu0 0.0
        %682 = vmatpush1.msra.mxu0 0.0
        %683 = vmatprep.subr.mxu0 0.0
        %684 = vmatpush1.msra.mxu0 0.0
        %685 = vmatprep.subr.mxu0 0.0
        %686 = vmatpush1.msra.mxu0 0.0
        %687 = vmatprep.subr.mxu0 0.0
        %688 = vmatpush1.msra.mxu0 0.0
        %689 = vmatprep.subr.mxu0 0.0
        %690 = vmatpush1.msra.mxu0 0.0
        %691 = vmatprep.subr.mxu0 0.0
        %692 = vmatpush1.msra.mxu0 0.0
        %693 = vmatprep.subr.mxu0 0.0
        %694 = vmatpush1.msra.mxu0 0.0
        %695 = vmatprep.subr.mxu0 0.0
        %696 = vmatpush1.msra.mxu0 0.0
        %697 = vmatprep.subr.mxu0 0.0
        %698 = vmatpush1.msra.mxu0 0.0
        %699 = vmatprep.subr.mxu0 0.0
        %700 = vmatpush1.msra.mxu0 0.0
        %701 = vmatprep.subr.mxu0 0.0
        %702 = vmatpush1.msra.mxu0 0.0
        %703 = vmatprep.subr.mxu0 0.0
        %704 = vmatpush1.msra.mxu0 0.0
        %705 = vmatprep.subr.mxu0 0.0
        %706 = vmatpush1.msra.mxu0 0.0
        %707 = vmatprep.subr.mxu0 0.0
        %708 = vmatpush1.msra.mxu0 0.0
        %709 = vmatprep.subr.mxu0 0.0
        %710 = vmatpush1.msra.mxu0 0.0
        %711 = vmatprep.subr.mxu0 0.0
        %712 = vmatpush1.msra.mxu0 0.0
        %713 = vmatprep.subr.mxu0 0.0
        %714 = vmatpush1.msra.mxu0 0.0
        %715 = vmatprep.subr.mxu0 0.0
        %716 = vmatpush1.msra.mxu0 0.0
        %717 = vmatprep.subr.mxu0 0.0
        %718 = vmatpush1.msra.mxu0 0.0
        %719 = vmatprep.subr.mxu0 0.0
        %720 = vmatpush1.msra.mxu0 0.0
        %721 = vmatprep.subr.mxu0 0.0
        %722 = vmatpush1.msra.mxu0 0.0
        %723 = vmatprep.subr.mxu0 0.0
        %724 = vmatpush1.msra.mxu0 0.0
        %725 = vmatprep.subr.mxu0 0.0
        %726 = vmatpush1.msra.mxu0 0.0
        %727 = vmatprep.subr.mxu0 0.0
        %728 = vmatpush1.msra.mxu0 0.0
        %729 = vmatprep.mubr.f32.mxu0 0.0
        %730 = vmatmul.mubr.f32.gmra.mrb[0].mxu0 %v663
        %v731 = vpop.f32.mrb[0].mxu0
        %v732 = vadd.f32 0.0, %v731
        %v733 = vpop.f32.mrb[0].mxu0
        %734 = vdwg.mxu0
        %v735 = vadd.f32 %v654, %v732
        %v736 = vld [vmem:[%s5] sm:$0x1]
        %v738 = vlaneseq
        %v739 = vshrl.u32 %v738, 7
        %v740 = vsub.s32 0, %v739
        %v741 = vrot.slane %v736, %v740
        %v743 = vadd.f32 %v735, %v741
        %vm744 = vcmp.eq.s32.totalorder %v502, 0
        %v745 = vrot.slane %v743, 7
        %v746 = vsel %vm744, 0.0, %v745
        %v747 = vrot.slane %v743, 1
        %v748 = vsel %vm503, 0.0, %v747
        %v749 = vld [vmem:[#allocation11] sm:$0xff]
        %v750 = vld [vmem:[#allocation11 + $0x8] sm:$0xff]
        %v751 = vld [vmem:[#allocation11 + $0x10] sm:$0xff]
        %v752 = vld [vmem:[#allocation11 + $0x18] sm:$0xff]
        %v753 = vld [vmem:[#allocation13] sm:$0xff]
        %v754 = vld [vmem:[#allocation13 + $0x8] sm:$0xff]
        %v755 = vld [vmem:[#allocation13 + $0x10] sm:$0xff]
        %v756 = vld [vmem:[#allocation13 + $0x18] sm:$0xff]
        %v758 = vsel %vm661, %v746, 0
        %760 = vmatprep.subr.mxu0 0.0
        %761 = vmatpush1.msra.mxu0 %v753
        %762 = vmatprep.subr.mxu0 0.0
        %763 = vmatpush1.msra.mxu0 %v754
        %764 = vmatprep.subr.mxu0 0.0
        %765 = vmatpush1.msra.mxu0 %v755
        %766 = vmatprep.subr.mxu0 0.0
        %767 = vmatpush1.msra.mxu0 %v756
        %768 = vmatprep.subr.mxu0 0.0
        %769 = vmatpush1.msra.mxu0 0.0
        %770 = vmatprep.subr.mxu0 0.0
        %771 = vmatpush1.msra.mxu0 0.0
        %772 = vmatprep.subr.mxu0 0.0
        %773 = vmatpush1.msra.mxu0 0.0
        %774 = vmatprep.subr.mxu0 0.0
        %775 = vmatpush1.msra.mxu0 0.0
        %776 = vmatprep.subr.mxu0 0.0
        %777 = vmatpush1.msra.mxu0 0.0
        %778 = vmatprep.subr.mxu0 0.0
        %779 = vmatpush1.msra.mxu0 0.0
        %780 = vmatprep.subr.mxu0 0.0
        %781 = vmatpush1.msra.mxu0 0.0
        %782 = vmatprep.subr.mxu0 0.0
        %783 = vmatpush1.msra.mxu0 0.0
        %784 = vmatprep.subr.mxu0 0.0
        %785 = vmatpush1.msra.mxu0 0.0
        %786 = vmatprep.subr.mxu0 0.0
        %787 = vmatpush1.msra.mxu0 0.0
        %788 = vmatprep.subr.mxu0 0.0
        %789 = vmatpush1.msra.mxu0 0.0
        %790 = vmatprep.subr.mxu0 0.0
        %791 = vmatpush1.msra.mxu0 0.0
        %792 = vmatprep.subr.mxu0 0.0
        %793 = vmatpush1.msra.mxu0 0.0
        %794 = vmatprep.subr.mxu0 0.0
        %795 = vmatpush1.msra.mxu0 0.0
        %796 = vmatprep.subr.mxu0 0.0
        %797 = vmatpush1.msra.mxu0 0.0
        %798 = vmatprep.subr.mxu0 0.0
        %799 = vmatpush1.msra.mxu0 0.0
        %800 = vmatprep.subr.mxu0 0.0
        %801 = vmatpush1.msra.mxu0 0.0
        %802 = vmatprep.subr.mxu0 0.0
        %803 = vmatpush1.msra.mxu0 0.0
        %804 = vmatprep.subr.mxu0 0.0
        %805 = vmatpush1.msra.mxu0 0.0
        %806 = vmatprep.subr.mxu0 0.0
        %807 = vmatpush1.msra.mxu0 0.0
        %808 = vmatprep.subr.mxu0 0.0
        %809 = vmatpush1.msra.mxu0 0.0
        %810 = vmatprep.subr.mxu0 0.0
        %811 = vmatpush1.msra.mxu0 0.0
        %812 = vmatprep.subr.mxu0 0.0
        %813 = vmatpush1.msra.mxu0 0.0
        %814 = vmatprep.subr.mxu0 0.0
        %815 = vmatpush1.msra.mxu0 0.0
        %816 = vmatprep.subr.mxu0 0.0
        %817 = vmatpush1.msra.mxu0 0.0
        %818 = vmatprep.subr.mxu0 0.0
        %819 = vmatpush1.msra.mxu0 0.0
        %820 = vmatprep.subr.mxu0 0.0
        %821 = vmatpush1.msra.mxu0 0.0
        %822 = vmatprep.subr.mxu0 0.0
        %823 = vmatpush1.msra.mxu0 0.0
        %824 = vmatprep.mubr.f32.mxu0 0.0
        %825 = vmatmul.mubr.f32.gmra.mrb[0].mxu0 %v758
        %v826 = vpop.f32.mrb[0].mxu0
        %v827 = vadd.f32 0.0, %v826
        %v828 = vpop.f32.mrb[0].mxu0
        %829 = vdwg.mxu0
        %v831 = vsel %vm661, %v743, 0
        %833 = vmatprep.subr.mxu0 0.0
        %834 = vmatpush1.msra.mxu0 %v749
        %835 = vmatprep.subr.mxu0 0.0
        %836 = vmatpush1.msra.mxu0 %v750
        %837 = vmatprep.subr.mxu0 0.0
        %838 = vmatpush1.msra.mxu0 %v751
        %839 = vmatprep.subr.mxu0 0.0
        %840 = vmatpush1.msra.mxu0 %v752
        %841 = vmatprep.subr.mxu0 0.0
        %842 = vmatpush1.msra.mxu0 0.0
        %843 = vmatprep.subr.mxu0 0.0
        %844 = vmatpush1.msra.mxu0 0.0
        %845 = vmatprep.subr.mxu0 0.0
        %846 = vmatpush1.msra.mxu0 0.0
        %847 = vmatprep.subr.mxu0 0.0
        %848 = vmatpush1.msra.mxu0 0.0
        %849 = vmatprep.subr.mxu0 0.0
        %850 = vmatpush1.msra.mxu0 0.0
        %851 = vmatprep.subr.mxu0 0.0
        %852 = vmatpush1.msra.mxu0 0.0
        %853 = vmatprep.subr.mxu0 0.0
        %854 = vmatpush1.msra.mxu0 0.0
        %855 = vmatprep.subr.mxu0 0.0
        %856 = vmatpush1.msra.mxu0 0.0
        %857 = vmatprep.subr.mxu0 0.0
        %858 = vmatpush1.msra.mxu0 0.0
        %859 = vmatprep.subr.mxu0 0.0
        %860 = vmatpush1.msra.mxu0 0.0
        %861 = vmatprep.subr.mxu0 0.0
        %862 = vmatpush1.msra.mxu0 0.0
        %863 = vmatprep.subr.mxu0 0.0
        %864 = vmatpush1.msra.mxu0 0.0
        %865 = vmatprep.subr.mxu0 0.0
        %866 = vmatpush1.msra.mxu0 0.0
        %867 = vmatprep.subr.mxu0 0.0
        %868 = vmatpush1.msra.mxu0 0.0
        %869 = vmatprep.subr.mxu0 0.0
        %870 = vmatpush1.msra.mxu0 0.0
        %871 = vmatprep.subr.mxu0 0.0
        %872 = vmatpush1.msra.mxu0 0.0
        %873 = vmatprep.subr.mxu0 0.0
        %874 = vmatpush1.msra.mxu0 0.0
        %875 = vmatprep.subr.mxu0 0.0
        %876 = vmatpush1.msra.mxu0 0.0
        %877 = vmatprep.subr.mxu0 0.0
        %878 = vmatpush1.msra.mxu0 0.0
        %879 = vmatprep.subr.mxu0 0.0
        %880 = vmatpush1.msra.mxu0 0.0
        %881 = vmatprep.subr.mxu0 0.0
        %882 = vmatpush1.msra.mxu0 0.0
        %883 = vmatprep.subr.mxu0 0.0
        %884 = vmatpush1.msra.mxu0 0.0
        %885 = vmatprep.subr.mxu0 0.0
        %886 = vmatpush1.msra.mxu0 0.0
        %887 = vmatprep.subr.mxu0 0.0
        %888 = vmatpush1.msra.mxu0 0.0
        %889 = vmatprep.subr.mxu0 0.0
        %890 = vmatpush1.msra.mxu0 0.0
        %891 = vmatprep.subr.mxu0 0.0
        %892 = vmatpush1.msra.mxu0 0.0
        %893 = vmatprep.subr.mxu0 0.0
        %894 = vmatpush1.msra.mxu0 0.0
        %895 = vmatprep.subr.mxu0 0.0
        %896 = vmatpush1.msra.mxu0 0.0
        %897 = vmatprep.mubr.f32.mxu0 0.0
        %898 = vmatmul.mubr.f32.gmra.mrb[0].mxu0 %v831
        %v899 = vpop.f32.mrb[0].mxu0
        %v900 = vadd.f32 %v827, %v899
        %v901 = vpop.f32.mrb[0].mxu0
        %902 = vdwg.mxu0
        %v903 = vld [vmem:[#allocation14] sm:$0xff]
        %v904 = vld [vmem:[#allocation14 + $0x8] sm:$0xff]
        %v905 = vld [vmem:[#allocation14 + $0x10] sm:$0xff]
        %v906 = vld [vmem:[#allocation14 + $0x18] sm:$0xff]
        %v908 = vsel %vm661, %v748, 0
        %910 = vmatprep.subr.mxu0 0.0
        %911 = vmatpush1.msra.mxu0 %v903
        %912 = vmatprep.subr.mxu0 0.0
        %913 = vmatpush1.msra.mxu0 %v904
        %914 = vmatprep.subr.mxu0 0.0
        %915 = vmatpush1.msra.mxu0 %v905
        %916 = vmatprep.subr.mxu0 0.0
        %917 = vmatpush1.msra.mxu0 %v906
        %918 = vmatprep.subr.mxu0 0.0
        %919 = vmatpush1.msra.mxu0 0.0
        %920 = vmatprep.subr.mxu0 0.0
        %921 = vmatpush1.msra.mxu0 0.0
        %922 = vmatprep.subr.mxu0 0.0
        %923 = vmatpush1.msra.mxu0 0.0
        %924 = vmatprep.subr.mxu0 0.0
        %925 = vmatpush1.msra.mxu0 0.0
        %926 = vmatprep.subr.mxu0 0.0
        %927 = vmatpush1.msra.mxu0 0.0
        %928 = vmatprep.subr.mxu0 0.0
        %929 = vmatpush1.msra.mxu0 0.0
        %930 = vmatprep.subr.mxu0 0.0
        %931 = vmatpush1.msra.mxu0 0.0
        %932 = vmatprep.subr.mxu0 0.0
        %933 = vmatpush1.msra.mxu0 0.0
        %934 = vmatprep.subr.mxu0 0.0
        %935 = vmatpush1.msra.mxu0 0.0
        %936 = vmatprep.subr.mxu0 0.0
        %937 = vmatpush1.msra.mxu0 0.0
        %938 = vmatprep.subr.mxu0 0.0
        %939 = vmatpush1.msra.mxu0 0.0
        %940 = vmatprep.subr.mxu0 0.0
        %941 = vmatpush1.msra.mxu0 0.0
        %942 = vmatprep.subr.mxu0 0.0
        %943 = vmatpush1.msra.mxu0 0.0
        %944 = vmatprep.subr.mxu0 0.0
        %945 = vmatpush1.msra.mxu0 0.0
        %946 = vmatprep.subr.mxu0 0.0
        %947 = vmatpush1.msra.mxu0 0.0
        %948 = vmatprep.subr.mxu0 0.0
        %949 = vmatpush1.msra.mxu0 0.0
        %950 = vmatprep.subr.mxu0 0.0
        %951 = vmatpush1.msra.mxu0 0.0
        %952 = vmatprep.subr.mxu0 0.0
        %953 = vmatpush1.msra.mxu0 0.0
        %954 = vmatprep.subr.mxu0 0.0
        %955 = vmatpush1.msra.mxu0 0.0
        %956 = vmatprep.subr.mxu0 0.0
        %957 = vmatpush1.msra.mxu0 0.0
        %958 = vmatprep.subr.mxu0 0.0
        %959 = vmatpush1.msra.mxu0 0.0
        %960 = vmatprep.subr.mxu0 0.0
        %961 = vmatpush1.msra.mxu0 0.0
        %962 = vmatprep.subr.mxu0 0.0
        %963 = vmatpush1.msra.mxu0 0.0
        %964 = vmatprep.subr.mxu0 0.0
        %965 = vmatpush1.msra.mxu0 0.0
        %966 = vmatprep.subr.mxu0 0.0
        %967 = vmatpush1.msra.mxu0 0.0
        %968 = vmatprep.subr.mxu0 0.0
        %969 = vmatpush1.msra.mxu0 0.0
        %970 = vmatprep.subr.mxu0 0.0
        %971 = vmatpush1.msra.mxu0 0.0
        %972 = vmatprep.subr.mxu0 0.0
        %973 = vmatpush1.msra.mxu0 0.0
        %974 = vmatprep.mubr.f32.mxu0 0.0
        %975 = vmatmul.mubr.f32.gmra.mrb[0].mxu0 %v908
        %v976 = vpop.f32.mrb[0].mxu0
        %v977 = vadd.f32 0.0, %v976
        %v978 = vpop.f32.mrb[0].mxu0
        %979 = vdwg.mxu0
        %v980 = vadd.f32 %v900, %v977
        %v981 = vld [vmem:[%s9] sm:$0x1]
        %v983 = vlaneseq
        %v984 = vshrl.u32 %v983, 7
        %v985 = vsub.s32 0, %v984
        %v986 = vrot.slane %v981, %v985
        %v988 = vadd.f32 %v980, %v986
        %989 = vst.msk [vmem:[%s498] sm:$0xff] %vm661, %v988
        %s990 = sand.u32 %s261, 1
        %s991 = scalar_lea.sflag [#allocation4], %s990
        %s992 = sand.u32 %s261, 1
        %s993 = smul.addr %s992, 8
        %s994 = scalar_lea.vmem [#allocation16], %s993
        // Predicated region
        $region93: #{tpu_custom_call.1} parent=59 // pred_check
          %p995 = pneg %p271
        $region94: #{tpu_custom_call.1} parent=59 // pred_check_branch
          %997 = sbr.rel (%p995) target = $region96
        $region95: #{tpu_custom_call.1} parent=59 // pred_region
          %s999 = ssub.s32 128, 128
          %1000 = vsyncadd %s991, %s999
          %s1001 = smul.addr %s33, 128
          %s1002 = scalar_lea.hbm %s10, %s1001
          %s1004 = sshll.u32 %s994, 4
          %s1005 = int_to_ptr.vmem [resolvable:$true] %s1004
          %1007 = dma.vmem_to_hbm [thread:$0]  %s1005, 128, %s1002, %s991
        $region96: #{tpu_custom_call.1} parent=59 // pred_fallthru
          _
      $region60: #{tpu_custom_call.1} parent=5 // pred_fallthru
        _
      %p1008 = scmp.le.s32.totalorder 2, %s28
      // Predicated region
      $region97: #{tpu_custom_call.1} parent=5 // pred_check
        %p1009 = pneg %p1008
      $region98: #{tpu_custom_call.1} parent=5 // pred_check_branch
        %1011 = sbr.rel (%p1009) target = $region100
      $region99: #{tpu_custom_call.1} parent=5 // pred_region
        %s1012 = ssub.s32 %s28, 2
        // Predicated region
        $region101: #{tpu_custom_call.1} parent=99 // pred_check
          %p1013 = pneg %p277
        $region102: #{tpu_custom_call.1} parent=99 // pred_check_branch
          %1015 = sbr.rel (%p1013) target = $region104
        $region103: #{tpu_custom_call.1} parent=99 // pred_region
          %s1016 = sand.u32 %s262, 1
          %s1017 = scalar_lea.sflag [#allocation4], %s1016
          %s1018 = sand.u32 %s262, 1
          %s1019 = smul.addr %s1018, 8
          %s1020 = scalar_lea.vmem [#allocation16], %s1019
          %1021 = dma.done %s1017, 128
        $region104: #{tpu_custom_call.1} parent=99 // pred_fallthru
          _
      $region100: #{tpu_custom_call.1} parent=5 // pred_fallthru
        _
    $region6: #{tpu_custom_call.1} parent=1 // loop_footer
      %s32 = sadd.s32 1, %s28
    $region7: #{tpu_custom_call.1} parent=1 // loop_footer_branch
      %27 = sbr.rel target = $region3
    $region8: #{tpu_custom_call.1} parent=1 // loop_exit
      _
    %1022 = vsyncpa [#allocation3], 1
    %s1023 = scalar_lea.sflag [#allocation3], 1
    %1024 = vsyncpa %s1023, 1
    %1025 = vsyncpa [#allocation6], 1
    %s1026 = scalar_lea.sflag [#allocation6], 1
    %1027 = vsyncpa %s1026, 1
    %1028 = vsyncpa [#allocation9], 1
    %1029 = vsyncpa [#allocation12], 1
    %1030 = vsyncpa [#allocation15], 1
    %1031 = vsyncpa [#allocation4], 1
    %s1032 = scalar_lea.sflag [#allocation4], 1
    %1033 = vsyncpa %s1032, 1

</llo_original>
